<compile_context>
chip_gen: v7x
topology: tpu7x:2x2x1
jax: 0.10.0
libtpu: 0.0.40
codegen_flags: <defaults>
</compile_context>

<pallas_src>
import functools

import jax
import jax.numpy as jnp
from jax.experimental import pallas as pl
from jax.experimental.pallas import tpu as pltpu

LEAKY_SLOPE = 0.2


def _round_up(x, m):
    return ((x + m - 1) // m) * m


def classifier_kernel(x_ref, w1_ref, b1_ref, w2_ref, b2_ref, w3_ref, b3_ref, o_ref):
    # One batch tile per grid step; all three matmuls + activations fused.
    # x is cast per-tile to the matmul dtype (no wrapper-side cast / HBM pass);
    # MXU accumulation is f32; bias add, LeakyReLU and sigmoid stay f32.
    x = x_ref[...].astype(w1_ref.dtype)                                    # (TM, L)
    h1 = jnp.dot(x, w1_ref[...], preferred_element_type=jnp.float32) + b1_ref[...]
    h1 = jnp.where(h1 >= 0, h1, LEAKY_SLOPE * h1)                          # (TM, H1p) f32
    h2 = jnp.dot(h1.astype(w2_ref.dtype), w2_ref[...],
                 preferred_element_type=jnp.float32) + b2_ref[...]
    h2 = jnp.where(h2 >= 0, h2, LEAKY_SLOPE * h2)                          # (TM, H2p) f32
    h3 = jnp.dot(h2.astype(w3_ref.dtype), w3_ref[...],
                 preferred_element_type=jnp.float32) + b3_ref[...]         # (TM, O)
    o_ref[...] = jax.nn.sigmoid(h3).astype(o_ref.dtype)                    # exact O lanes


def prepare_params(params, matmul_dtype=jnp.bfloat16):
    """One-time parameter prep (run once, outside the per-step forward path).

    Zero-pads the hidden dims 100->128 and 50->128 (padded lanes stay inert:
    zero weight columns + zero bias -> LeakyReLU(0)=0 -> zero weight rows),
    keeps the true output width for W3/b3, and casts the weight matrices to
    the MXU operand dtype. Biases stay f32.
    Weights are stored as (in, out), i.e. the transpose of nn.Linear's (out, in).
    """
    w1, b1, w2, b2, w3, b3 = params
    L, H1 = w1.shape
    H2, O = w3.shape
    H1p = _round_up(H1, 128)
    H2p = _round_up(H2, 128)

    w1p = jnp.zeros((L, H1p), matmul_dtype).at[:, :H1].set(w1.astype(matmul_dtype))
    b1p = jnp.zeros((1, H1p), jnp.float32).at[:, :H1].set(
        b1.reshape(1, H1).astype(jnp.float32))
    w2p = jnp.zeros((H1p, H2p), matmul_dtype).at[:H1, :H2].set(w2.astype(matmul_dtype))
    b2p = jnp.zeros((1, H2p), jnp.float32).at[:, :H2].set(
        b2.reshape(1, H2).astype(jnp.float32))
    w3p = jnp.zeros((H2p, O), matmul_dtype).at[:H2, :].set(w3.astype(matmul_dtype))
    b3p = b3.reshape(1, O).astype(jnp.float32)
    return (w1p, b1p, w2p, b2p, w3p, b3p)


@functools.partial(jax.jit, static_argnames=("block_m",))
def classifier_forward(x, prepared_params, *, block_m=1024):
    """x: (B, latent_size) float32. Returns (B, output_size) float32."""
    w1p, b1p, w2p, b2p, w3p, b3p = prepared_params
    B, L = x.shape
    H1p = w1p.shape[1]
    H2p = w2p.shape[1]
    O = w3p.shape[1]

    # Batch tiling: big tiles amortize per-grid-step overhead; clamp so the grid
    # has >=2 steps when possible (lets v7x shard the batch axis across both
    # TensorCores) and never below the 8-row sublane granule. No batch padding:
    # cdiv grid + Pallas partial-tile handling (rows are independent; OOB rows
    # in the tail tile read padding and their stores are masked off).
    bm = min(block_m, _round_up(max(-(-B // 2), 1), 8))
    bm = max(bm, 8)
    grid = (pl.cdiv(B, bm),)

    resident = lambda i: (0, 0)  # weights/biases: constant block index -> stay in VMEM

    return pl.pallas_call(
        classifier_kernel,
        out_shape=jax.ShapeDtypeStruct((B, O), jnp.float32),
        grid_spec=pltpu.PrefetchScalarGridSpec(
            num_scalar_prefetch=0,
            grid=grid,
            in_specs=[
                pl.BlockSpec((bm, L), lambda i: (i, 0)),   # x tile (streams)
                pl.BlockSpec((L, H1p), resident),          # W1
                pl.BlockSpec((1, H1p), resident),          # b1
                pl.BlockSpec((H1p, H2p), resident),        # W2
                pl.BlockSpec((1, H2p), resident),          # b2
                pl.BlockSpec((H2p, O), resident),          # W3 (true output width)
                pl.BlockSpec((1, O), resident),            # b3
            ],
            out_specs=pl.BlockSpec((bm, O), lambda i: (i, 0)),
        ),
        compiler_params=pltpu.CompilerParams(
            dimension_semantics=("parallel",),
            vmem_limit_bytes=32 * 1024 * 1024,
        ),
    )(x, w1p, b1p, w2p, b2p, w3p, b3p)


def init_params(key, latent_size, output_size):
    """Deterministic synthetic parameters matching nn.Linear shapes.

    PyTorch stores Linear weights as (out, in); we store the transpose (in, out).
    """
    k1, k2, k3, k4, k5, k6 = jax.random.split(key, 6)
    w1 = jax.random.normal(k1, (latent_size, 100), jnp.float32) * 0.1
    b1 = jax.random.normal(k2, (1, 100), jnp.float32) * 0.1
    w2 = jax.random.normal(k3, (100, 50), jnp.float32) * 0.1
    b2 = jax.random.normal(k4, (1, 50), jnp.float32) * 0.1
    w3 = jax.random.normal(k5, (50, output_size), jnp.float32) * 0.1
    b3 = jax.random.normal(k6, (1, output_size), jnp.float32) * 0.1
    return (w1, b1, w2, b2, w3, b3)


def reference_forward(x, params):
    w1, b1, w2, b2, w3, b3 = params
    h = jnp.dot(x, w1) + b1
    h = jnp.where(h >= 0, h, LEAKY_SLOPE * h)
    h = jnp.dot(h, w2) + b2
    h = jnp.where(h >= 0, h, LEAKY_SLOPE * h)
    h = jnp.dot(h, w3) + b3
    return jax.nn.sigmoid(h)


if __name__ == "__main__":
    latent_size = 32
    output_size = 4
    batch = 8

    key = jax.random.PRNGKey(0)
    kx, kp = jax.random.split(key)
    x = jax.random.normal(kx, (batch, latent_size), jnp.float32)
    params = init_params(kp, latent_size, output_size)
    ref = reference_forward(x, params)

    # Default path: bf16 MXU operands, f32 accumulation + f32 elementwise.
    p_bf16 = prepare_params(params, jnp.bfloat16)
    out_bf16 = jax.block_until_ready(classifier_forward(x, p_bf16))
    assert out_bf16.shape == (batch, output_size)
    assert jnp.allclose(out_bf16, ref, atol=2e-2, rtol=2e-2), "bf16 mismatch vs reference"

    # f32 MXU path: near-exact parity with the reference.
    p_f32 = prepare_params(params, jnp.float32)
    out_f32 = jax.block_until_ready(classifier_forward(x, p_f32))
    assert out_f32.shape == (batch, output_size)
    assert jnp.allclose(out_f32, ref, atol=1e-5, rtol=1e-5), "f32 mismatch vs reference"

    # Non-multiple-of-8 batch exercises the cdiv partial tail tile + masked store.
    x2 = jax.random.normal(jax.random.PRNGKey(1), (37, latent_size), jnp.float32)
    ref2 = reference_forward(x2, params)
    out2 = jax.block_until_ready(classifier_forward(x2, p_f32))
    assert out2.shape == (37, output_size)
    assert jnp.allclose(out2, ref2, atol=1e-5, rtol=1e-5), "partial-tile mismatch"

    print("KERNEL_OK")
</pallas_src>

<mosaic_0001>
module attributes {stable_mosaic.version = 11 : i64} {
  func.func @classifier_kernel(%arg0: i32, %arg1: memref<8x32xf32, #tpu.memory_space<vmem>>, %arg2: memref<32x128xbf16, #tpu.memory_space<vmem>>, %arg3: memref<1x128xf32, #tpu.memory_space<vmem>>, %arg4: memref<128x128xbf16, #tpu.memory_space<vmem>>, %arg5: memref<1x128xf32, #tpu.memory_space<vmem>>, %arg6: memref<128x4xbf16, #tpu.memory_space<vmem>>, %arg7: memref<1x4xf32, #tpu.memory_space<vmem>>, %arg8: memref<8x4xf32, #tpu.memory_space<vmem>>) attributes {dimension_semantics = [#tpu.dimension_semantics<parallel>], iteration_bounds = array<i64: 1>, scalar_prefetch = 0 : i64, scratch_operands = 0 : i64, tpu.core_type = #tpu.core_type<tc>, window_params = [{transform_indices = @transform_0, window_bounds = array<i64: 8, 32>}, {pipeline_mode = #tpu.pipeline_mode<synchronous>, transform_indices = @transform_1, window_bounds = array<i64: 32, 128>}, {pipeline_mode = #tpu.pipeline_mode<synchronous>, transform_indices = @transform_2, window_bounds = array<i64: 1, 128>}, {pipeline_mode = #tpu.pipeline_mode<synchronous>, transform_indices = @transform_3, window_bounds = array<i64: 128, 128>}, {pipeline_mode = #tpu.pipeline_mode<synchronous>, transform_indices = @transform_4, window_bounds = array<i64: 1, 128>}, {pipeline_mode = #tpu.pipeline_mode<synchronous>, transform_indices = @transform_5, window_bounds = array<i64: 128, 4>}, {pipeline_mode = #tpu.pipeline_mode<synchronous>, transform_indices = @transform_6, window_bounds = array<i64: 1, 4>}, {transform_indices = @transform_7, window_bounds = array<i64: 8, 4>}]} {
    %c0 = arith.constant 0 : index
    %c0_0 = arith.constant 0 : index
    %0 = vector.load %arg1[%c0, %c0_0] : memref<8x32xf32, #tpu.memory_space<vmem>>, vector<8x32xf32>
    %1 = arith.truncf %0 : vector<8x32xf32> to vector<8x32xbf16>
    %c0_1 = arith.constant 0 : index
    %c0_2 = arith.constant 0 : index
    %2 = vector.load %arg2[%c0_1, %c0_2] : memref<32x128xbf16, #tpu.memory_space<vmem>>, vector<32x128xbf16>
    %cst = arith.constant dense<0.000000e+00> : vector<8x128xf32>
    %3 = tpu.matmul %1, %2, %cst {dimension_numbers = #tpu.dot_dimension_numbers<[1], [0], [0], [1], [0, 0, 1, 1], [], []>} : vector<8x32xbf16>, vector<32x128xbf16>, vector<8x128xf32> -> vector<8x128xf32>
    %c0_3 = arith.constant 0 : index
    %c0_4 = arith.constant 0 : index
    %4 = vector.load %arg3[%c0_3, %c0_4] : memref<1x128xf32, #tpu.memory_space<vmem>>, vector<1x128xf32>
    %5 = vector.broadcast %4 : vector<1x128xf32> to vector<8x128xf32>
    %6 = arith.addf %3, %5 : vector<8x128xf32>
    %cst_5 = arith.constant 0.000000e+00 : f32
    %7 = vector.broadcast %cst_5 : f32 to vector<8x128xf32>
    %8 = arith.cmpf oge, %6, %7 : vector<8x128xf32>
    %cst_6 = arith.constant 2.000000e-01 : f32
    %9 = vector.broadcast %cst_6 : f32 to vector<8x128xf32>
    %10 = arith.mulf %9, %6 : vector<8x128xf32>
    %11 = arith.select %8, %6, %10 : vector<8x128xi1>, vector<8x128xf32>
    %12 = arith.truncf %11 : vector<8x128xf32> to vector<8x128xbf16>
    %c0_7 = arith.constant 0 : index
    %c0_8 = arith.constant 0 : index
    %13 = vector.load %arg4[%c0_7, %c0_8] : memref<128x128xbf16, #tpu.memory_space<vmem>>, vector<128x128xbf16>
    %cst_9 = arith.constant dense<0.000000e+00> : vector<8x128xf32>
    %14 = tpu.matmul %12, %13, %cst_9 {dimension_numbers = #tpu.dot_dimension_numbers<[1], [0], [0], [1], [0, 0, 1, 1], [], []>} : vector<8x128xbf16>, vector<128x128xbf16>, vector<8x128xf32> -> vector<8x128xf32>
    %c0_10 = arith.constant 0 : index
    %c0_11 = arith.constant 0 : index
    %15 = vector.load %arg5[%c0_10, %c0_11] : memref<1x128xf32, #tpu.memory_space<vmem>>, vector<1x128xf32>
    %16 = vector.broadcast %15 : vector<1x128xf32> to vector<8x128xf32>
    %17 = arith.addf %14, %16 : vector<8x128xf32>
    %cst_12 = arith.constant 0.000000e+00 : f32
    %18 = vector.broadcast %cst_12 : f32 to vector<8x128xf32>
    %19 = arith.cmpf oge, %17, %18 : vector<8x128xf32>
    %cst_13 = arith.constant 2.000000e-01 : f32
    %20 = vector.broadcast %cst_13 : f32 to vector<8x128xf32>
    %21 = arith.mulf %20, %17 : vector<8x128xf32>
    %22 = arith.select %19, %17, %21 : vector<8x128xi1>, vector<8x128xf32>
    %23 = arith.truncf %22 : vector<8x128xf32> to vector<8x128xbf16>
    %c0_14 = arith.constant 0 : index
    %c0_15 = arith.constant 0 : index
    %24 = vector.load %arg6[%c0_14, %c0_15] : memref<128x4xbf16, #tpu.memory_space<vmem>>, vector<128x4xbf16>
    %cst_16 = arith.constant dense<0.000000e+00> : vector<8x4xf32>
    %25 = tpu.matmul %23, %24, %cst_16 {dimension_numbers = #tpu.dot_dimension_numbers<[1], [0], [0], [1], [0, 0, 1, 1], [], []>} : vector<8x128xbf16>, vector<128x4xbf16>, vector<8x4xf32> -> vector<8x4xf32>
    %c0_17 = arith.constant 0 : index
    %c0_18 = arith.constant 0 : index
    %26 = vector.load %arg7[%c0_17, %c0_18] : memref<1x4xf32, #tpu.memory_space<vmem>>, vector<1x4xf32>
    %27 = vector.broadcast %26 : vector<1x4xf32> to vector<8x4xf32>
    %28 = arith.addf %25, %27 : vector<8x4xf32>
    %29 = arith.negf %28 : vector<8x4xf32>
    %30 = math.exp %29 : vector<8x4xf32>
    %cst_19 = arith.constant 1.000000e+00 : f32
    %31 = vector.broadcast %cst_19 : f32 to vector<8x4xf32>
    %32 = arith.addf %31, %30 : vector<8x4xf32>
    %33 = arith.divf %31, %32 : vector<8x4xf32>
    %c0_20 = arith.constant 0 : index
    %c0_21 = arith.constant 0 : index
    %34 = vector.load %arg8[%c0_20, %c0_21] : memref<8x4xf32, #tpu.memory_space<vmem>>, vector<8x4xf32>
    tpu.vector_store %arg8[%c0_20, %c0_21], %33 {strides = array<i32>} : memref<8x4xf32, #tpu.memory_space<vmem>>, vector<8x4xf32>,
    return
  }
  func.func @transform_0(%arg0: i32) -> (i32, i32) {
    %c0_i32 = arith.constant 0 : i32
    %c0_i32_0 = arith.constant 0 : i32
    return %arg0, %c0_i32 : i32, i32
  }
  func.func @transform_1(%arg0: i32) -> (i32, i32) {
    %c0_i32 = arith.constant 0 : i32
    %c0_i32_0 = arith.constant 0 : i32
    %c0_i32_1 = arith.constant 0 : i32
    return %c0_i32, %c0_i32_0 : i32, i32
  }
  func.func @transform_2(%arg0: i32) -> (i32, i32) {
    %c0_i32 = arith.constant 0 : i32
    %c0_i32_0 = arith.constant 0 : i32
    %c0_i32_1 = arith.constant 0 : i32
    return %c0_i32, %c0_i32_0 : i32, i32
  }
  func.func @transform_3(%arg0: i32) -> (i32, i32) {
    %c0_i32 = arith.constant 0 : i32
    %c0_i32_0 = arith.constant 0 : i32
    %c0_i32_1 = arith.constant 0 : i32
    return %c0_i32, %c0_i32_0 : i32, i32
  }
  func.func @transform_4(%arg0: i32) -> (i32, i32) {
    %c0_i32 = arith.constant 0 : i32
    %c0_i32_0 = arith.constant 0 : i32
    %c0_i32_1 = arith.constant 0 : i32
    return %c0_i32, %c0_i32_0 : i32, i32
  }
  func.func @transform_5(%arg0: i32) -> (i32, i32) {
    %c0_i32 = arith.constant 0 : i32
    %c0_i32_0 = arith.constant 0 : i32
    %c0_i32_1 = arith.constant 0 : i32
    return %c0_i32, %c0_i32_0 : i32, i32
  }
  func.func @transform_6(%arg0: i32) -> (i32, i32) {
    %c0_i32 = arith.constant 0 : i32
    %c0_i32_0 = arith.constant 0 : i32
    %c0_i32_1 = arith.constant 0 : i32
    return %c0_i32, %c0_i32_0 : i32, i32
  }
  func.func @transform_7(%arg0: i32) -> (i32, i32) {
    %c0_i32 = arith.constant 0 : i32
    %c0_i32_0 = arith.constant 0 : i32
    return %arg0, %c0_i32 : i32, i32
  }
}

</mosaic_0001>

<llo_original>
// kernel: classifier_forward.1
$region0: #{classifier_forward.1}
  #allocation0 [shape = 'u32[]', space=smem, size = 0x4, offset = 0x4, fixed_abs, tag = 'smem constant byte address 0x4 - core index']
  #allocation1 [shape = 'u32[144,128]{1,0:T(1,128)}', space=vmem, size = 0x12000, scoped, tag = 'internal scratch']
  %s0 = inlined_call_operand.vmem [shape: f32[8,32], index: 0, kind: input, shape index: {}]
  %s1 = inlined_call_operand.hbm [shape: bf16[32,128], index: 1, kind: input, shape index: {}]
  %s2 = inlined_call_operand.vmem [shape: f32[1,128], index: 2, kind: input, shape index: {}]
  %s3 = inlined_call_operand.vmem [shape: bf16[128,128], index: 3, kind: input, shape index: {}]
  %s4 = inlined_call_operand.vmem [shape: f32[1,128], index: 4, kind: input, shape index: {}]
  %s5 = inlined_call_operand.vmem [shape: bf16[128,4], index: 5, kind: input, shape index: {}]
  %s6 = inlined_call_operand.vmem [shape: f32[1,4], index: 6, kind: input, shape index: {}]
  %s7 = inlined_call_operand.vmem [shape: f32[8,4], index: 7, kind: output, shape index: {}]
  %s8 = sld [smem:[#allocation0]]
  $region42: #{classifier_forward.1} parent=0
    _
  %s10 = ssub.s32 1, %s8
  %s11 = scalar_select 0, %s10, %s8
  $region1: #{classifier_forward.1} parent=0
    #allocation2 [shape = 'u8[8192]{0}', space=vmem, size = 0x2000, scoped, tag = 'input window, operand 1, single buffered']
    #allocation3 [shape = 's32[1]{0}', space=sflag, size = 0x4, scoped, tag = 'scoped memory for classifier_forward.1']
    %12 = vsyncpa [#allocation3], 0
    // Predicated region
    $region2: #{classifier_forward.1} parent=1 // pred_check
      _
    $region3: #{classifier_forward.1} parent=1 // pred_check_branch
      %14 = sbr.rel (0) target = $region5
    $region4: #{classifier_forward.1} parent=1 // pred_region
      _
    $region5: #{classifier_forward.1} parent=1 // pred_fallthru
      _
    // Predicated region
    $region6: #{classifier_forward.1} parent=1 // pred_check
      _
    $region7: #{classifier_forward.1} parent=1 // pred_check_branch
      %16 = sbr.rel (0) target = $region9
    $region8: #{classifier_forward.1} parent=1 // pred_region
      %s18 = ssub.s32 256, 256
      %19 = vsyncadd [#allocation3], %s18
      %s20 = sshll.u32 [#allocation2], 4
      %s21 = int_to_ptr.vmem [resolvable:$true] %s20
      %26 = dma.hbm_to_vmem [thread:$0]  %s1, 256, %s21, [#allocation3], 64, 64, 4
    $region9: #{classifier_forward.1} parent=1 // pred_fallthru
      _
    // Predicated region
    $region10: #{classifier_forward.1} parent=1 // pred_check
      _
    $region11: #{classifier_forward.1} parent=1 // pred_check_branch
      %28 = sbr.rel (0) target = $region13
    $region12: #{classifier_forward.1} parent=1 // pred_region
      _
    $region13: #{classifier_forward.1} parent=1 // pred_fallthru
      _
    // Predicated region
    $region14: #{classifier_forward.1} parent=1 // pred_check
      _
    $region15: #{classifier_forward.1} parent=1 // pred_check_branch
      %30 = sbr.rel (0) target = $region17
    $region16: #{classifier_forward.1} parent=1 // pred_region
      _
    $region17: #{classifier_forward.1} parent=1 // pred_fallthru
      _
    // Predicated region
    $region18: #{classifier_forward.1} parent=1 // pred_check
      _
    $region19: #{classifier_forward.1} parent=1 // pred_check_branch
      %32 = sbr.rel (0) target = $region21
    $region20: #{classifier_forward.1} parent=1 // pred_region
      _
    $region21: #{classifier_forward.1} parent=1 // pred_fallthru
      _
    // Predicated region
    $region22: #{classifier_forward.1} parent=1 // pred_check
      _
    $region23: #{classifier_forward.1} parent=1 // pred_check_branch
      %34 = sbr.rel (0) target = $region25
    $region24: #{classifier_forward.1} parent=1 // pred_region
      _
    $region25: #{classifier_forward.1} parent=1 // pred_fallthru
      _
    // Predicated region
    $region26: #{classifier_forward.1} parent=1 // pred_check
      _
    $region27: #{classifier_forward.1} parent=1 // pred_check_branch
      %36 = sbr.rel (0) target = $region29
    $region28: #{classifier_forward.1} parent=1 // pred_region
      _
    $region29: #{classifier_forward.1} parent=1 // pred_fallthru
      _
    // Predicated region
    $region30: #{classifier_forward.1} parent=1 // pred_check
      _
    $region31: #{classifier_forward.1} parent=1 // pred_check_branch
      %38 = sbr.rel (0) target = $region33
    $region32: #{classifier_forward.1} parent=1 // pred_region
      %39 = dma.done [#allocation3], 256
    $region33: #{classifier_forward.1} parent=1 // pred_fallthru
      _
    %v41 = vld [vmem:[%s0] sm:$0xff]
    %v42 = vpack.c.bf16 %v41, %v41
    %v43 = vld [vmem:[#allocation2] sm:$0xf]
    %v44 = vld [vmem:[#allocation2 + $0x4] sm:$0xf]
    %v45 = vld [vmem:[#allocation2 + $0x8] sm:$0xf]
    %v46 = vld [vmem:[#allocation2 + $0xc] sm:$0xf]
    %v47 = vld [vmem:[%s2] sm:$0x1]
    %v49 = vlaneseq
    %v50 = vshrl.u32 %v49, 7
    %v51 = vsub.s32 0, %v50
    %v52 = vrot.slane %v47, %v51
    %v58 = vunpack.c.l.b16 %v43
    %v59 = vunpack.c.l.b16 %v44
    %v60 = vunpack.c.l.b16 %v45
    %v61 = vunpack.c.l.b16 %v46
    %v62 = vpack.c.b16 %v59, %v58
    %v63 = vpack.c.b16 %v61, %v60
    %vm66 = vcmask 261120
    %v68 = vsel %vm66, %v42, 0
    %70 = vmatprep.subr.bf16.mxu0 0
    %71 = vmatpush1.bf16.msra.mxu0 %v62
    %72 = vmatprep.subr.bf16.mxu0 0
    %73 = vmatpush1.bf16.msra.mxu0 %v63
    %74 = vmatprep.subr.bf16.mxu0 0
    %75 = vmatpush1.bf16.msra.mxu0 0
    %76 = vmatprep.subr.bf16.mxu0 0
    %77 = vmatpush1.bf16.msra.mxu0 0
    %78 = vmatprep.subr.bf16.mxu0 0
    %79 = vmatpush1.bf16.msra.mxu0 0
    %80 = vmatprep.subr.bf16.mxu0 0
    %81 = vmatpush1.bf16.msra.mxu0 0
    %82 = vmatprep.subr.bf16.mxu0 0
    %83 = vmatpush1.bf16.msra.mxu0 0
    %84 = vmatprep.subr.bf16.mxu0 0
    %85 = vmatpush1.bf16.msra.mxu0 0
    %86 = vmatprep.subr.bf16.mxu0 0
    %87 = vmatpush1.bf16.msra.mxu0 0
    %88 = vmatprep.subr.bf16.mxu0 0
    %89 = vmatpush1.bf16.msra.mxu0 0
    %90 = vmatprep.subr.bf16.mxu0 0
    %91 = vmatpush1.bf16.msra.mxu0 0
    %92 = vmatprep.subr.bf16.mxu0 0
    %93 = vmatpush1.bf16.msra.mxu0 0
    %94 = vmatprep.subr.bf16.mxu0 0
    %95 = vmatpush1.bf16.msra.mxu0 0
    %96 = vmatprep.subr.bf16.mxu0 0
    %97 = vmatpush1.bf16.msra.mxu0 0
    %98 = vmatprep.subr.bf16.mxu0 0
    %99 = vmatpush1.bf16.msra.mxu0 0
    %100 = vmatprep.subr.bf16.mxu0 0
    %101 = vmatpush1.bf16.msra.mxu0 0
    %102 = vmatprep.mubr.bf16.mxu0 0
    %103 = vmatmul.mubr.bf16.gmra.mrb[0].mxu0 %v68
    %v104 = vpop.f32.mrb[0].mxu0
    %v105 = vadd.f32 %v52, %v104
    %v106 = vpop.f32.mrb[0].mxu0
    %v107 = vpop.f32.mrb[0].mxu0
    %v108 = vpop.f32.mrb[0].mxu0
    %109 = vdwg.mxu0
    %vm110 = vcmp.ge.f32.partialorder %v105, 0.0
    %v111 = vmul.f32 %v105, 0.2
    %v112 = vsel %vm110, %v105, %v111
    %v113 = vpack.c.bf16 %v112, %v112
    %v114 = vld [vmem:[%s3] sm:$0xf]
    %v115 = vld [vmem:[%s3 + $0x4] sm:$0xf]
    %v116 = vld [vmem:[%s3 + $0x8] sm:$0xf]
    %v117 = vld [vmem:[%s3 + $0xc] sm:$0xf]
    %v118 = vld [vmem:[%s3 + $0x10] sm:$0xf]
    %v119 = vld [vmem:[%s3 + $0x14] sm:$0xf]
    %v120 = vld [vmem:[%s3 + $0x18] sm:$0xf]
    %v121 = vld [vmem:[%s3 + $0x1c] sm:$0xf]
    %v122 = vld [vmem:[%s3 + $0x20] sm:$0xf]
    %v123 = vld [vmem:[%s3 + $0x24] sm:$0xf]
    %v124 = vld [vmem:[%s3 + $0x28] sm:$0xf]
    %v125 = vld [vmem:[%s3 + $0x2c] sm:$0xf]
    %v126 = vld [vmem:[%s3 + $0x30] sm:$0xf]
    %v127 = vld [vmem:[%s3 + $0x34] sm:$0xf]
    %v128 = vld [vmem:[%s3 + $0x38] sm:$0xf]
    %v129 = vld [vmem:[%s3 + $0x3c] sm:$0xf]
    %v130 = vld [vmem:[%s4] sm:$0x1]
    %v132 = vlaneseq
    %v133 = vshrl.u32 %v132, 7
    %v134 = vsub.s32 0, %v133
    %v135 = vrot.slane %v130, %v134
    %v153 = vunpack.c.l.b16 %v114
    %v154 = vunpack.c.l.b16 %v115
    %v155 = vunpack.c.l.b16 %v116
    %v156 = vunpack.c.l.b16 %v117
    %v157 = vunpack.c.l.b16 %v118
    %v158 = vunpack.c.l.b16 %v119
    %v159 = vunpack.c.l.b16 %v120
    %v160 = vunpack.c.l.b16 %v121
    %v161 = vunpack.c.l.b16 %v122
    %v162 = vunpack.c.l.b16 %v123
    %v163 = vunpack.c.l.b16 %v124
    %v164 = vunpack.c.l.b16 %v125
    %v165 = vunpack.c.l.b16 %v126
    %v166 = vunpack.c.l.b16 %v127
    %v167 = vunpack.c.l.b16 %v128
    %v168 = vunpack.c.l.b16 %v129
    %v169 = vpack.c.b16 %v154, %v153
    %v170 = vpack.c.b16 %v156, %v155
    %v171 = vpack.c.b16 %v158, %v157
    %v172 = vpack.c.b16 %v160, %v159
    %v173 = vpack.c.b16 %v162, %v161
    %v174 = vpack.c.b16 %v164, %v163
    %v175 = vpack.c.b16 %v166, %v165
    %v176 = vpack.c.b16 %v168, %v167
    %185 = vmatprep.subr.bf16.mxu0 0
    %186 = vmatpush1.bf16.msra.mxu0 %v169
    %187 = vmatprep.subr.bf16.mxu0 0
    %188 = vmatpush1.bf16.msra.mxu0 %v170
    %189 = vmatprep.subr.bf16.mxu0 0
    %190 = vmatpush1.bf16.msra.mxu0 %v171
    %191 = vmatprep.subr.bf16.mxu0 0
    %192 = vmatpush1.bf16.msra.mxu0 %v172
    %193 = vmatprep.subr.bf16.mxu0 0
    %194 = vmatpush1.bf16.msra.mxu0 %v173
    %195 = vmatprep.subr.bf16.mxu0 0
    %196 = vmatpush1.bf16.msra.mxu0 %v174
    %197 = vmatprep.subr.bf16.mxu0 0
    %198 = vmatpush1.bf16.msra.mxu0 %v175
    %199 = vmatprep.subr.bf16.mxu0 0
    %200 = vmatpush1.bf16.msra.mxu0 %v176
    %201 = vmatprep.subr.bf16.mxu0 0
    %202 = vmatpush1.bf16.msra.mxu0 0
    %203 = vmatprep.subr.bf16.mxu0 0
    %204 = vmatpush1.bf16.msra.mxu0 0
    %205 = vmatprep.subr.bf16.mxu0 0
    %206 = vmatpush1.bf16.msra.mxu0 0
    %207 = vmatprep.subr.bf16.mxu0 0
    %208 = vmatpush1.bf16.msra.mxu0 0
    %209 = vmatprep.subr.bf16.mxu0 0
    %210 = vmatpush1.bf16.msra.mxu0 0
    %211 = vmatprep.subr.bf16.mxu0 0
    %212 = vmatpush1.bf16.msra.mxu0 0
    %213 = vmatprep.subr.bf16.mxu0 0
    %214 = vmatpush1.bf16.msra.mxu0 0
    %215 = vmatprep.subr.bf16.mxu0 0
    %216 = vmatpush1.bf16.msra.mxu0 0
    %217 = vmatprep.mubr.bf16.mxu0 0
    %218 = vmatmul.mubr.bf16.gmra.mrb[0].mxu0 %v113
    %v219 = vpop.f32.mrb[0].mxu0
    %v220 = vadd.f32 %v135, %v219
    %v221 = vpop.f32.mrb[0].mxu0
    %v222 = vpop.f32.mrb[0].mxu0
    %v223 = vpop.f32.mrb[0].mxu0
    %224 = vdwg.mxu0
    %vm225 = vcmp.ge.f32.partialorder %v220, 0.0
    %v226 = vmul.f32 %v220, 0.2
    %v227 = vsel %vm225, %v220, %v226
    %v228 = vpack.c.bf16 %v227, %v227
    %v229 = vld [vmem:[%s5] sm:$0xf]
    %v230 = vld [vmem:[%s5 + $0x4] sm:$0xf]
    %v231 = vld [vmem:[%s5 + $0x8] sm:$0xf]
    %v232 = vld [vmem:[%s5 + $0xc] sm:$0xf]
    %v233 = vld [vmem:[%s5 + $0x10] sm:$0xf]
    %v234 = vld [vmem:[%s5 + $0x14] sm:$0xf]
    %v235 = vld [vmem:[%s5 + $0x18] sm:$0xf]
    %v236 = vld [vmem:[%s5 + $0x1c] sm:$0xf]
    %v237 = vld [vmem:[%s5 + $0x20] sm:$0xf]
    %v238 = vld [vmem:[%s5 + $0x24] sm:$0xf]
    %v239 = vld [vmem:[%s5 + $0x28] sm:$0xf]
    %v240 = vld [vmem:[%s5 + $0x2c] sm:$0xf]
    %v241 = vld [vmem:[%s5 + $0x30] sm:$0xf]
    %v242 = vld [vmem:[%s5 + $0x34] sm:$0xf]
    %v243 = vld [vmem:[%s5 + $0x38] sm:$0xf]
    %v244 = vld [vmem:[%s5 + $0x3c] sm:$0xf]
    %v245 = vld [vmem:[%s6] sm:$0x1]
    %v247 = vlaneseq
    %v248 = vshrl.u32 %v247, 7
    %v249 = vsub.s32 0, %v248
    %v250 = vrot.slane %v245, %v249
    %v268 = vunpack.c.l.b16 %v229
    %v269 = vunpack.c.l.b16 %v230
    %v270 = vunpack.c.l.b16 %v231
    %v271 = vunpack.c.l.b16 %v232
    %v272 = vunpack.c.l.b16 %v233
    %v273 = vunpack.c.l.b16 %v234
    %v274 = vunpack.c.l.b16 %v235
    %v275 = vunpack.c.l.b16 %v236
    %v276 = vunpack.c.l.b16 %v237
    %v277 = vunpack.c.l.b16 %v238
    %v278 = vunpack.c.l.b16 %v239
    %v279 = vunpack.c.l.b16 %v240
    %v280 = vunpack.c.l.b16 %v241
    %v281 = vunpack.c.l.b16 %v242
    %v282 = vunpack.c.l.b16 %v243
    %v283 = vunpack.c.l.b16 %v244
    %v284 = vpack.c.b16 %v269, %v268
    %v285 = vpack.c.b16 %v271, %v270
    %v286 = vpack.c.b16 %v273, %v272
    %v287 = vpack.c.b16 %v275, %v274
    %v288 = vpack.c.b16 %v277, %v276
    %v289 = vpack.c.b16 %v279, %v278
    %v290 = vpack.c.b16 %v281, %v280
    %v291 = vpack.c.b16 %v283, %v282
    %300 = vmatprep.subr.bf16.mxu0 0
    %301 = vmatpush1.bf16.msra.mxu0 %v284
    %302 = vmatprep.subr.bf16.mxu0 0
    %303 = vmatpush1.bf16.msra.mxu0 %v285
    %304 = vmatprep.subr.bf16.mxu0 0
    %305 = vmatpush1.bf16.msra.mxu0 %v286
    %306 = vmatprep.subr.bf16.mxu0 0
    %307 = vmatpush1.bf16.msra.mxu0 %v287
    %308 = vmatprep.subr.bf16.mxu0 0
    %309 = vmatpush1.bf16.msra.mxu0 %v288
    %310 = vmatprep.subr.bf16.mxu0 0
    %311 = vmatpush1.bf16.msra.mxu0 %v289
    %312 = vmatprep.subr.bf16.mxu0 0
    %313 = vmatpush1.bf16.msra.mxu0 %v290
    %314 = vmatprep.subr.bf16.mxu0 0
    %315 = vmatpush1.bf16.msra.mxu0 %v291
    %316 = vmatprep.subr.bf16.mxu0 0
    %317 = vmatpush1.bf16.msra.mxu0 0
    %318 = vmatprep.subr.bf16.mxu0 0
    %319 = vmatpush1.bf16.msra.mxu0 0
    %320 = vmatprep.subr.bf16.mxu0 0
    %321 = vmatpush1.bf16.msra.mxu0 0
    %322 = vmatprep.subr.bf16.mxu0 0
    %323 = vmatpush1.bf16.msra.mxu0 0
    %324 = vmatprep.subr.bf16.mxu0 0
    %325 = vmatpush1.bf16.msra.mxu0 0
    %326 = vmatprep.subr.bf16.mxu0 0
    %327 = vmatpush1.bf16.msra.mxu0 0
    %328 = vmatprep.subr.bf16.mxu0 0
    %329 = vmatpush1.bf16.msra.mxu0 0
    %330 = vmatprep.subr.bf16.mxu0 0
    %331 = vmatpush1.bf16.msra.mxu0 0
    %332 = vmatprep.mubr.bf16.mxu0 0
    %333 = vmatmul.mubr.bf16.gmra.mrb[0].mxu0 %v228
    %v334 = vpop.f32.mrb[0].mxu0
    %v335 = vadd.f32 %v250, %v334
    %v336 = vpop.f32.mrb[0].mxu0
    %v337 = vpop.f32.mrb[0].mxu0
    %v338 = vpop.f32.mrb[0].mxu0
    %339 = vdwg.mxu0
    %v340 = vxor.u32 %v335, 2147483648
    %v341 = vmul.f32 %v340, 1.442695
    %v342 = vpow.pop %v341
    %v343 = vadd.f32 %v342, 1.0
    %v344 = vrcp.pop %v343
    %v345 = vmul.f32 1.0, %v344
    %vm346 = vcmask 31744
    %347 = vst.msk [vmem:[%s7] sm:$0xff] %vm346, %v345
    // Predicated region
    $region34: #{classifier_forward.1} parent=1 // pred_check
      _
    $region35: #{classifier_forward.1} parent=1 // pred_check_branch
      %349 = sbr.rel (0) target = $region37
    $region36: #{classifier_forward.1} parent=1 // pred_region
      _
    $region37: #{classifier_forward.1} parent=1 // pred_fallthru
      _
    // Predicated region
    $region38: #{classifier_forward.1} parent=1 // pred_check
      _
    $region39: #{classifier_forward.1} parent=1 // pred_check_branch
      %351 = sbr.rel (0) target = $region41
    $region40: #{classifier_forward.1} parent=1 // pred_region
      _
    $region41: #{classifier_forward.1} parent=1 // pred_fallthru
      _
    %352 = vsyncpa [#allocation3], 1

</llo_original>
